<compile_context>
chip_gen: v5e
topology: v5e:2x2
jax: 0.10.0
libtpu: 0.0.40
codegen_flags: <defaults>
</compile_context>

<pallas_src>
import functools

import jax
import jax.numpy as jnp
import numpy as np
from jax.experimental import pallas as pl
from jax.experimental.pallas import tpu as pltpu


# ----------------------------- configuration -------------------------------
PARAM_DICT = dict(
    res_scaler=2,           # coarsening factor
    boundary_c="periodic",  # boundary condition of coarse solver
    c_delta_x=0.25,         # coarse grid spacing
    c_delta_t=0.05,         # coarse solver substep
    delta_t_star=0.2,       # total propagation time per forward()
)
DOWNSAMPLING_TYPE = "Interpolation"
UPSAMPLING_TYPE = "Interpolation"

# bf16 matmul operands + f32 accumulation (review item); operators are
# bf16-exact, field operands lose mantissa bits.  Use jnp.float32 for exact
# f32 reproduction of the PyTorch module.
MATMUL_DTYPE = jnp.bfloat16


# --------------------------- device introspection ---------------------------
def _device_kind():
    try:
        return jax.devices()[0].device_kind.lower()
    except Exception:  # pragma: no cover - defensive
        return ""


def _gen_params():
    """Generation-aware (is_v7x, vmem_limit_bytes)."""
    kind = _device_kind()
    is_v7 = ("v7" in kind) or ("tpu7" in kind)
    if is_v7:
        vmem_limit = 48 * 1024 * 1024          # 64 MiB physical on v7x
    elif ("v5 lite" in kind) or ("v5e" in kind) or ("v6" in kind):
        vmem_limit = 96 * 1024 * 1024          # 128 MiB physical on v5e/v6e
    else:
        vmem_limit = 32 * 1024 * 1024          # conservative default
    return is_v7, vmem_limit


# ------------------------- operator construction ---------------------------
def _lap1d(n, dx, boundary_c):
    """1-D second-difference operator with 1/dx^2 folded in."""
    D = -2.0 * np.eye(n, dtype=np.float64)
    D += np.eye(n, k=1) + np.eye(n, k=-1)
    if boundary_c == "periodic":
        D[0, -1] += 1.0
        D[-1, 0] += 1.0
    # TODO(synk): 'absorbing' boundary condition of the original solver not
    # reconstructed (source not provided).
    return (D / (dx * dx)).astype(np.float32)


def _make_operators(H, W, scaler, boundary_c, dx, Bt, op_dtype):
    """Small shared row operators + lane-side block-diagonal (over Bt) ones."""
    Hc, Wc = H // scaler, W // scaler

    def avg_pool(nf, nc):
        P = np.zeros((nc, nf), np.float32)
        for i in range(nc):
            P[i, i * scaler:(i + 1) * scaler] = 1.0 / scaler
        return P

    Ph = avg_pool(H, Hc)                              # (Hc, H)  row restriction
    Pw = avg_pool(W, Wc)                              # (Wc, W)  col restriction
    Uh = (scaler * Ph.T).astype(np.float32)           # (H, Hc)  NN prolongation
    Uw = (scaler * Pw.T).astype(np.float32)           # (W, Wc)

    # Lane-side operators are block-diagonal over the Bt lane-packed batch
    # elements so batches never mix across lanes (small: O((Bt*W)*(Bt*Wc))).
    eye_bt = np.eye(Bt, dtype=np.float32)
    PrT = np.kron(eye_bt, Pw.T)                       # (Bt*W,  Bt*Wc)
    UrT = np.kron(eye_bt, Uw.T)                       # (Bt*Wc, Bt*W)
    DL = _lap1d(Hc, dx, boundary_c)                   # (Hc, Hc)
    DR = np.kron(eye_bt, _lap1d(Wc, dx, boundary_c))  # (Bt*Wc, Bt*Wc)

    # All entries (0.5, 1.0, +-1/dx^2, -2/dx^2) are exactly representable in
    # bf16 for the default parameters.
    return tuple(jnp.asarray(a, dtype=op_dtype)
                 for a in (Ph, PrT, Uh, UrT, DL, DR))


# ------------------------------- kernel -------------------------------------
def _e2e_kernel(x_ref, ph_ref, prT_ref, uh_ref, urT_ref, dl_ref, dr_ref,
                o_ref, *, H, dt, n_sub, mm_dtype):
    """Bt lane-packed batch elements: restrict -> Verlet substeps -> prolong."""
    f32 = jnp.float32

    def mm(a, b):
        return jnp.dot(a.astype(mm_dtype), b.astype(mm_dtype),
                       preferred_element_type=f32)

    Ph, PrT = ph_ref[...], prT_ref[...]
    Uh, UrT = uh_ref[...], urT_ref[...]
    DL, DR = dl_ref[...], dr_ref[...]

    def restrict(a):                  # (H, Bt*W) -> (Hc, Bt*Wc)
        return mm(mm(Ph, a), PrT)

    def prolong(a):                   # (Hc, Bt*Wc) -> (H, Bt*W)
        return mm(mm(Uh, a), UrT)

    def lap(a):                       # periodic 5-pt Laplacian, 1/dx^2 baked in
        return mm(DL, a) + mm(a, DR)

    # Input rows: [0,H) = u, [H,2H) = u_t, [2H,3H) = velocity c (aux dropped).
    u_fine = x_ref[0:H, :]
    ut_fine = x_ref[H:2 * H, :]
    c_fine = x_ref[2 * H:3 * H, :]

    uc = restrict(u_fine)
    utc = restrict(ut_fine)
    cc = restrict(c_fine)

    c2 = cc * cc
    a_coef = (0.5 * dt * dt) * c2     # hoisted out of the Verlet loop
    v_coef = (0.5 * dt) * c2

    uc_prev = uc
    # velocity-Verlet integration of u_tt = c^2 * Laplacian(u).
    # Laplacian reuse: l1 of step i is l0 of step i+1 -> n_sub+1 laps total.
    l0 = lap(uc)
    for _ in range(n_sub):            # n_sub is tiny & static -> full unroll
        u_new = uc + dt * utc + a_coef * l0
        l1 = lap(u_new)
        utc = utc + v_coef * (l0 + l1)
        uc = u_new
        l0 = l1

    # Per-field prolongation stored straight into lane-dense output row
    # slices; velocity channel passes through in-kernel (no wrapper concat).
    o_ref[0:H, :] = prolong(uc).astype(o_ref.dtype)
    o_ref[H:2 * H, :] = prolong(utc).astype(o_ref.dtype)
    o_ref[2 * H:3 * H, :] = prolong(uc_prev).astype(o_ref.dtype)
    o_ref[3 * H:4 * H, :] = c_fine.astype(o_ref.dtype)


# ------------------------------- wrapper ------------------------------------
def model_end_to_end(x,
                     param_dict=PARAM_DICT,
                     downsampling_type=DOWNSAMPLING_TYPE,
                     upsampling_type=UPSAMPLING_TYPE):
    assert downsampling_type == "Interpolation" and upsampling_type == "Interpolation"
    # TODO(synk): 'CNN' downsampling/upsampling path (with skip connections)
    # is not reconstructed (source not provided).
    B, C, H, W = x.shape
    assert C == 4
    scaler = int(param_dict["res_scaler"])
    dx = float(param_dict["c_delta_x"])
    dt = float(param_dict["c_delta_t"])
    n_sub = max(1, int(round(param_dict["delta_t_star"] / dt)))
    assert H % scaler == 0 and W % scaler == 0
    Wc = W // scaler

    is_v7, vmem_limit = _gen_params()

    # Lane-pack Bt batch elements per grid step.  Target Bt*Wc == 128 exactly
    # (lane-dense, unmasked stores); on v7x split the batch across >= 2 grid
    # steps so the second TensorCore is used, but only when the resulting
    # block lane widths remain multiples of 128 (or the full lane extent).
    if B * Wc <= 128:
        Bt = B
        if is_v7 and B >= 2:
            bt_half = (B + 1) // 2
            if (bt_half * W) % 128 == 0 and (bt_half * Wc) % 128 == 0:
                Bt = bt_half
    else:
        if 128 % Wc == 0:
            Bt = max(1, 128 // Wc)      # Bt*Wc == 128 exactly
        else:
            Bt = B                      # fall back to a single full-extent step
    G = pl.cdiv(B, Bt)
    B_pad = G * Bt

    x32 = x.astype(jnp.float32)
    # Drop the unused aux channel before packing (25% less input traffic).
    x_sel = x32[:, jnp.array([0, 1, 3]), :, :]            # [B, 3, H, W]
    if B_pad != B:
        x_sel = jnp.pad(x_sel, ((0, B_pad - B), (0, 0), (0, 0), (0, 0)))
    # [B, 3, H, W] -> (3H, B_pad*W): channel/row stack along sublanes, batch
    # packed side-by-side along lanes (lane-dense loads and stores).
    x_packed = jnp.transpose(x_sel, (1, 2, 0, 3)).reshape(3 * H, B_pad * W)

    Ph, PrT, Uh, UrT, DL, DR = _make_operators(
        H, W, scaler, param_dict["boundary_c"], dx, Bt, MATMUL_DTYPE)

    kernel = functools.partial(_e2e_kernel, H=H, dt=dt, n_sub=n_sub,
                               mm_dtype=MATMUL_DTYPE)

    def full2d(a):
        # Constant operators: same (full) block every grid step.
        return pl.BlockSpec(a.shape, lambda g: (0, 0))

    out_packed = pl.pallas_call(
        kernel,
        out_shape=jax.ShapeDtypeStruct((4 * H, B_pad * W), jnp.float32),
        grid_spec=pltpu.PrefetchScalarGridSpec(
            num_scalar_prefetch=0,
            grid=(G,),
            in_specs=[
                pl.BlockSpec((3 * H, Bt * W), lambda g: (0, g)),
                full2d(Ph), full2d(PrT), full2d(Uh),
                full2d(UrT), full2d(DL), full2d(DR),
            ],
            out_specs=pl.BlockSpec((4 * H, Bt * W), lambda g: (0, g)),
        ),
        compiler_params=pltpu.CompilerParams(
            dimension_semantics=("parallel",),   # shards across TCs when G >= 2
            vmem_limit_bytes=vmem_limit),
    )(x_packed, Ph, PrT, Uh, UrT, DL, DR)

    # (4H, B_pad*W) -> [B, 4, H, W]: single transpose, no concatenate (the
    # velocity channel was already emitted by the kernel).
    out = out_packed.reshape(4, H, B_pad, W).transpose(2, 0, 1, 3)[:B]
    return out


# --------------------------------- main --------------------------------------
if __name__ == "__main__":
    B, C, H, W = 2, 4, 16, 16
    key = jax.random.PRNGKey(0)
    k1, k2, k3 = jax.random.split(key, 3)
    u = 0.1 * jax.random.normal(k1, (B, 1, H, W), jnp.float32)
    ut = 0.01 * jax.random.normal(k2, (B, 1, H, W), jnp.float32)
    aux = jnp.zeros((B, 1, H, W), jnp.float32)
    c = 1.0 + 0.1 * jax.random.uniform(k3, (B, 1, H, W), jnp.float32)
    x = jnp.concatenate([u, ut, aux, c], axis=1)  # [B, 4, H, W], NCHW

    out = jax.block_until_ready(model_end_to_end(x))
    assert out.shape == (B, C, H, W)
    assert bool(jnp.all(jnp.isfinite(out)))
    print("KERNEL_OK")
</pallas_src>

<mosaic_0001>
module attributes {stable_mosaic.version = 11 : i64} {
  func.func @_e2e_kernel(%arg0: i32, %arg1: memref<48x32xf32, #tpu.memory_space<vmem>>, %arg2: memref<8x16xbf16, #tpu.memory_space<vmem>>, %arg3: memref<32x16xbf16, #tpu.memory_space<vmem>>, %arg4: memref<16x8xbf16, #tpu.memory_space<vmem>>, %arg5: memref<16x32xbf16, #tpu.memory_space<vmem>>, %arg6: memref<8x8xbf16, #tpu.memory_space<vmem>>, %arg7: memref<16x16xbf16, #tpu.memory_space<vmem>>, %arg8: memref<64x32xf32, #tpu.memory_space<vmem>>) attributes {dimension_semantics = [#tpu.dimension_semantics<parallel>], iteration_bounds = array<i64: 1>, scalar_prefetch = 0 : i64, scratch_operands = 0 : i64, tpu.core_type = #tpu.core_type<tc>, window_params = [{transform_indices = @transform_0, window_bounds = array<i64: 48, 32>}, {pipeline_mode = #tpu.pipeline_mode<synchronous>, transform_indices = @transform_1, window_bounds = array<i64: 8, 16>}, {pipeline_mode = #tpu.pipeline_mode<synchronous>, transform_indices = @transform_2, window_bounds = array<i64: 32, 16>}, {pipeline_mode = #tpu.pipeline_mode<synchronous>, transform_indices = @transform_3, window_bounds = array<i64: 16, 8>}, {pipeline_mode = #tpu.pipeline_mode<synchronous>, transform_indices = @transform_4, window_bounds = array<i64: 16, 32>}, {pipeline_mode = #tpu.pipeline_mode<synchronous>, transform_indices = @transform_5, window_bounds = array<i64: 8, 8>}, {pipeline_mode = #tpu.pipeline_mode<synchronous>, transform_indices = @transform_6, window_bounds = array<i64: 16, 16>}, {transform_indices = @transform_7, window_bounds = array<i64: 64, 32>}]} {
    %c0 = arith.constant 0 : index
    %c0_0 = arith.constant 0 : index
    %0 = vector.load %arg2[%c0, %c0_0] : memref<8x16xbf16, #tpu.memory_space<vmem>>, vector<8x16xbf16>
    %c0_1 = arith.constant 0 : index
    %c0_2 = arith.constant 0 : index
    %1 = vector.load %arg3[%c0_1, %c0_2] : memref<32x16xbf16, #tpu.memory_space<vmem>>, vector<32x16xbf16>
    %c0_3 = arith.constant 0 : index
    %c0_4 = arith.constant 0 : index
    %2 = vector.load %arg4[%c0_3, %c0_4] : memref<16x8xbf16, #tpu.memory_space<vmem>>, vector<16x8xbf16>
    %c0_5 = arith.constant 0 : index
    %c0_6 = arith.constant 0 : index
    %3 = vector.load %arg5[%c0_5, %c0_6] : memref<16x32xbf16, #tpu.memory_space<vmem>>, vector<16x32xbf16>
    %c0_7 = arith.constant 0 : index
    %c0_8 = arith.constant 0 : index
    %4 = vector.load %arg6[%c0_7, %c0_8] : memref<8x8xbf16, #tpu.memory_space<vmem>>, vector<8x8xbf16>
    %c0_9 = arith.constant 0 : index
    %c0_10 = arith.constant 0 : index
    %5 = vector.load %arg7[%c0_9, %c0_10] : memref<16x16xbf16, #tpu.memory_space<vmem>>, vector<16x16xbf16>
    %c0_11 = arith.constant 0 : index
    %c0_12 = arith.constant 0 : index
    %6 = vector.load %arg1[%c0_11, %c0_12] : memref<48x32xf32, #tpu.memory_space<vmem>>, vector<16x32xf32>
    %c16 = arith.constant 16 : index
    %c0_13 = arith.constant 0 : index
    %7 = vector.load %arg1[%c16, %c0_13] : memref<48x32xf32, #tpu.memory_space<vmem>>, vector<16x32xf32>
    %c32 = arith.constant 32 : index
    %c0_14 = arith.constant 0 : index
    %8 = vector.load %arg1[%c32, %c0_14] : memref<48x32xf32, #tpu.memory_space<vmem>>, vector<16x32xf32>
    %9 = arith.truncf %6 : vector<16x32xf32> to vector<16x32xbf16>
    %cst = arith.constant dense<0.000000e+00> : vector<8x32xf32>
    %10 = tpu.matmul %0, %9, %cst {dimension_numbers = #tpu.dot_dimension_numbers<[1], [0], [0], [1], [0, 0, 1, 1], [], []>} : vector<8x16xbf16>, vector<16x32xbf16>, vector<8x32xf32> -> vector<8x32xf32>
    %11 = arith.truncf %10 : vector<8x32xf32> to vector<8x32xbf16>
    %cst_15 = arith.constant dense<0.000000e+00> : vector<8x16xf32>
    %12 = tpu.matmul %11, %1, %cst_15 {dimension_numbers = #tpu.dot_dimension_numbers<[1], [0], [0], [1], [0, 0, 1, 1], [], []>} : vector<8x32xbf16>, vector<32x16xbf16>, vector<8x16xf32> -> vector<8x16xf32>
    %13 = arith.truncf %7 : vector<16x32xf32> to vector<16x32xbf16>
    %cst_16 = arith.constant dense<0.000000e+00> : vector<8x32xf32>
    %14 = tpu.matmul %0, %13, %cst_16 {dimension_numbers = #tpu.dot_dimension_numbers<[1], [0], [0], [1], [0, 0, 1, 1], [], []>} : vector<8x16xbf16>, vector<16x32xbf16>, vector<8x32xf32> -> vector<8x32xf32>
    %15 = arith.truncf %14 : vector<8x32xf32> to vector<8x32xbf16>
    %cst_17 = arith.constant dense<0.000000e+00> : vector<8x16xf32>
    %16 = tpu.matmul %15, %1, %cst_17 {dimension_numbers = #tpu.dot_dimension_numbers<[1], [0], [0], [1], [0, 0, 1, 1], [], []>} : vector<8x32xbf16>, vector<32x16xbf16>, vector<8x16xf32> -> vector<8x16xf32>
    %17 = arith.truncf %8 : vector<16x32xf32> to vector<16x32xbf16>
    %cst_18 = arith.constant dense<0.000000e+00> : vector<8x32xf32>
    %18 = tpu.matmul %0, %17, %cst_18 {dimension_numbers = #tpu.dot_dimension_numbers<[1], [0], [0], [1], [0, 0, 1, 1], [], []>} : vector<8x16xbf16>, vector<16x32xbf16>, vector<8x32xf32> -> vector<8x32xf32>
    %19 = arith.truncf %18 : vector<8x32xf32> to vector<8x32xbf16>
    %cst_19 = arith.constant dense<0.000000e+00> : vector<8x16xf32>
    %20 = tpu.matmul %19, %1, %cst_19 {dimension_numbers = #tpu.dot_dimension_numbers<[1], [0], [0], [1], [0, 0, 1, 1], [], []>} : vector<8x32xbf16>, vector<32x16xbf16>, vector<8x16xf32> -> vector<8x16xf32>
    %21 = arith.mulf %20, %20 : vector<8x16xf32>
    %cst_20 = arith.constant 1.250000e-03 : f32
    %22 = vector.broadcast %cst_20 : f32 to vector<8x16xf32>
    %23 = arith.mulf %22, %21 : vector<8x16xf32>
    %cst_21 = arith.constant 2.500000e-02 : f32
    %24 = vector.broadcast %cst_21 : f32 to vector<8x16xf32>
    %25 = arith.mulf %24, %21 : vector<8x16xf32>
    %26 = arith.truncf %12 : vector<8x16xf32> to vector<8x16xbf16>
    %cst_22 = arith.constant dense<0.000000e+00> : vector<8x16xf32>
    %27 = tpu.matmul %4, %26, %cst_22 {dimension_numbers = #tpu.dot_dimension_numbers<[1], [0], [0], [1], [0, 0, 1, 1], [], []>} : vector<8x8xbf16>, vector<8x16xbf16>, vector<8x16xf32> -> vector<8x16xf32>
    %28 = arith.truncf %12 : vector<8x16xf32> to vector<8x16xbf16>
    %cst_23 = arith.constant dense<0.000000e+00> : vector<8x16xf32>
    %29 = tpu.matmul %28, %5, %cst_23 {dimension_numbers = #tpu.dot_dimension_numbers<[1], [0], [0], [1], [0, 0, 1, 1], [], []>} : vector<8x16xbf16>, vector<16x16xbf16>, vector<8x16xf32> -> vector<8x16xf32>
    %30 = arith.addf %27, %29 : vector<8x16xf32>
    %cst_24 = arith.constant 5.000000e-02 : f32
    %31 = vector.broadcast %cst_24 : f32 to vector<8x16xf32>
    %32 = arith.mulf %31, %16 : vector<8x16xf32>
    %33 = arith.addf %12, %32 : vector<8x16xf32>
    %34 = arith.mulf %23, %30 : vector<8x16xf32>
    %35 = arith.addf %33, %34 : vector<8x16xf32>
    %36 = arith.truncf %35 : vector<8x16xf32> to vector<8x16xbf16>
    %cst_25 = arith.constant dense<0.000000e+00> : vector<8x16xf32>
    %37 = tpu.matmul %4, %36, %cst_25 {dimension_numbers = #tpu.dot_dimension_numbers<[1], [0], [0], [1], [0, 0, 1, 1], [], []>} : vector<8x8xbf16>, vector<8x16xbf16>, vector<8x16xf32> -> vector<8x16xf32>
    %38 = arith.truncf %35 : vector<8x16xf32> to vector<8x16xbf16>
    %cst_26 = arith.constant dense<0.000000e+00> : vector<8x16xf32>
    %39 = tpu.matmul %38, %5, %cst_26 {dimension_numbers = #tpu.dot_dimension_numbers<[1], [0], [0], [1], [0, 0, 1, 1], [], []>} : vector<8x16xbf16>, vector<16x16xbf16>, vector<8x16xf32> -> vector<8x16xf32>
    %40 = arith.addf %37, %39 : vector<8x16xf32>
    %41 = arith.addf %30, %40 : vector<8x16xf32>
    %42 = arith.mulf %25, %41 : vector<8x16xf32>
    %43 = arith.addf %16, %42 : vector<8x16xf32>
    %cst_27 = arith.constant 5.000000e-02 : f32
    %44 = vector.broadcast %cst_27 : f32 to vector<8x16xf32>
    %45 = arith.mulf %44, %43 : vector<8x16xf32>
    %46 = arith.addf %35, %45 : vector<8x16xf32>
    %47 = arith.mulf %23, %40 : vector<8x16xf32>
    %48 = arith.addf %46, %47 : vector<8x16xf32>
    %49 = arith.truncf %48 : vector<8x16xf32> to vector<8x16xbf16>
    %cst_28 = arith.constant dense<0.000000e+00> : vector<8x16xf32>
    %50 = tpu.matmul %4, %49, %cst_28 {dimension_numbers = #tpu.dot_dimension_numbers<[1], [0], [0], [1], [0, 0, 1, 1], [], []>} : vector<8x8xbf16>, vector<8x16xbf16>, vector<8x16xf32> -> vector<8x16xf32>
    %51 = arith.truncf %48 : vector<8x16xf32> to vector<8x16xbf16>
    %cst_29 = arith.constant dense<0.000000e+00> : vector<8x16xf32>
    %52 = tpu.matmul %51, %5, %cst_29 {dimension_numbers = #tpu.dot_dimension_numbers<[1], [0], [0], [1], [0, 0, 1, 1], [], []>} : vector<8x16xbf16>, vector<16x16xbf16>, vector<8x16xf32> -> vector<8x16xf32>
    %53 = arith.addf %50, %52 : vector<8x16xf32>
    %54 = arith.addf %40, %53 : vector<8x16xf32>
    %55 = arith.mulf %25, %54 : vector<8x16xf32>
    %56 = arith.addf %43, %55 : vector<8x16xf32>
    %cst_30 = arith.constant 5.000000e-02 : f32
    %57 = vector.broadcast %cst_30 : f32 to vector<8x16xf32>
    %58 = arith.mulf %57, %56 : vector<8x16xf32>
    %59 = arith.addf %48, %58 : vector<8x16xf32>
    %60 = arith.mulf %23, %53 : vector<8x16xf32>
    %61 = arith.addf %59, %60 : vector<8x16xf32>
    %62 = arith.truncf %61 : vector<8x16xf32> to vector<8x16xbf16>
    %cst_31 = arith.constant dense<0.000000e+00> : vector<8x16xf32>
    %63 = tpu.matmul %4, %62, %cst_31 {dimension_numbers = #tpu.dot_dimension_numbers<[1], [0], [0], [1], [0, 0, 1, 1], [], []>} : vector<8x8xbf16>, vector<8x16xbf16>, vector<8x16xf32> -> vector<8x16xf32>
    %64 = arith.truncf %61 : vector<8x16xf32> to vector<8x16xbf16>
    %cst_32 = arith.constant dense<0.000000e+00> : vector<8x16xf32>
    %65 = tpu.matmul %64, %5, %cst_32 {dimension_numbers = #tpu.dot_dimension_numbers<[1], [0], [0], [1], [0, 0, 1, 1], [], []>} : vector<8x16xbf16>, vector<16x16xbf16>, vector<8x16xf32> -> vector<8x16xf32>
    %66 = arith.addf %63, %65 : vector<8x16xf32>
    %67 = arith.addf %53, %66 : vector<8x16xf32>
    %68 = arith.mulf %25, %67 : vector<8x16xf32>
    %69 = arith.addf %56, %68 : vector<8x16xf32>
    %cst_33 = arith.constant 5.000000e-02 : f32
    %70 = vector.broadcast %cst_33 : f32 to vector<8x16xf32>
    %71 = arith.mulf %70, %69 : vector<8x16xf32>
    %72 = arith.addf %61, %71 : vector<8x16xf32>
    %73 = arith.mulf %23, %66 : vector<8x16xf32>
    %74 = arith.addf %72, %73 : vector<8x16xf32>
    %75 = arith.truncf %74 : vector<8x16xf32> to vector<8x16xbf16>
    %cst_34 = arith.constant dense<0.000000e+00> : vector<8x16xf32>
    %76 = tpu.matmul %4, %75, %cst_34 {dimension_numbers = #tpu.dot_dimension_numbers<[1], [0], [0], [1], [0, 0, 1, 1], [], []>} : vector<8x8xbf16>, vector<8x16xbf16>, vector<8x16xf32> -> vector<8x16xf32>
    %77 = arith.truncf %74 : vector<8x16xf32> to vector<8x16xbf16>
    %cst_35 = arith.constant dense<0.000000e+00> : vector<8x16xf32>
    %78 = tpu.matmul %77, %5, %cst_35 {dimension_numbers = #tpu.dot_dimension_numbers<[1], [0], [0], [1], [0, 0, 1, 1], [], []>} : vector<8x16xbf16>, vector<16x16xbf16>, vector<8x16xf32> -> vector<8x16xf32>
    %79 = arith.addf %76, %78 : vector<8x16xf32>
    %80 = arith.addf %66, %79 : vector<8x16xf32>
    %81 = arith.mulf %25, %80 : vector<8x16xf32>
    %82 = arith.addf %69, %81 : vector<8x16xf32>
    %83 = arith.truncf %74 : vector<8x16xf32> to vector<8x16xbf16>
    %cst_36 = arith.constant dense<0.000000e+00> : vector<16x16xf32>
    %84 = tpu.matmul %2, %83, %cst_36 {dimension_numbers = #tpu.dot_dimension_numbers<[1], [0], [0], [1], [0, 0, 1, 1], [], []>} : vector<16x8xbf16>, vector<8x16xbf16>, vector<16x16xf32> -> vector<16x16xf32>
    %85 = arith.truncf %84 : vector<16x16xf32> to vector<16x16xbf16>
    %cst_37 = arith.constant dense<0.000000e+00> : vector<16x32xf32>
    %86 = tpu.matmul %85, %3, %cst_37 {dimension_numbers = #tpu.dot_dimension_numbers<[1], [0], [0], [1], [0, 0, 1, 1], [], []>} : vector<16x16xbf16>, vector<16x32xbf16>, vector<16x32xf32> -> vector<16x32xf32>
    %c0_38 = arith.constant 0 : index
    %c0_39 = arith.constant 0 : index
    %87 = vector.load %arg8[%c0_38, %c0_39] : memref<64x32xf32, #tpu.memory_space<vmem>>, vector<16x32xf32>
    tpu.vector_store %arg8[%c0_38, %c0_39], %86 {strides = array<i32>} : memref<64x32xf32, #tpu.memory_space<vmem>>, vector<16x32xf32>,
    %88 = arith.truncf %82 : vector<8x16xf32> to vector<8x16xbf16>
    %cst_40 = arith.constant dense<0.000000e+00> : vector<16x16xf32>
    %89 = tpu.matmul %2, %88, %cst_40 {dimension_numbers = #tpu.dot_dimension_numbers<[1], [0], [0], [1], [0, 0, 1, 1], [], []>} : vector<16x8xbf16>, vector<8x16xbf16>, vector<16x16xf32> -> vector<16x16xf32>
    %90 = arith.truncf %89 : vector<16x16xf32> to vector<16x16xbf16>
    %cst_41 = arith.constant dense<0.000000e+00> : vector<16x32xf32>
    %91 = tpu.matmul %90, %3, %cst_41 {dimension_numbers = #tpu.dot_dimension_numbers<[1], [0], [0], [1], [0, 0, 1, 1], [], []>} : vector<16x16xbf16>, vector<16x32xbf16>, vector<16x32xf32> -> vector<16x32xf32>
    %c16_42 = arith.constant 16 : index
    %c0_43 = arith.constant 0 : index
    %92 = vector.load %arg8[%c16_42, %c0_43] : memref<64x32xf32, #tpu.memory_space<vmem>>, vector<16x32xf32>
    tpu.vector_store %arg8[%c16_42, %c0_43], %91 {strides = array<i32>} : memref<64x32xf32, #tpu.memory_space<vmem>>, vector<16x32xf32>,
    %93 = arith.truncf %12 : vector<8x16xf32> to vector<8x16xbf16>
    %cst_44 = arith.constant dense<0.000000e+00> : vector<16x16xf32>
    %94 = tpu.matmul %2, %93, %cst_44 {dimension_numbers = #tpu.dot_dimension_numbers<[1], [0], [0], [1], [0, 0, 1, 1], [], []>} : vector<16x8xbf16>, vector<8x16xbf16>, vector<16x16xf32> -> vector<16x16xf32>
    %95 = arith.truncf %94 : vector<16x16xf32> to vector<16x16xbf16>
    %cst_45 = arith.constant dense<0.000000e+00> : vector<16x32xf32>
    %96 = tpu.matmul %95, %3, %cst_45 {dimension_numbers = #tpu.dot_dimension_numbers<[1], [0], [0], [1], [0, 0, 1, 1], [], []>} : vector<16x16xbf16>, vector<16x32xbf16>, vector<16x32xf32> -> vector<16x32xf32>
    %c32_46 = arith.constant 32 : index
    %c0_47 = arith.constant 0 : index
    %97 = vector.load %arg8[%c32_46, %c0_47] : memref<64x32xf32, #tpu.memory_space<vmem>>, vector<16x32xf32>
    tpu.vector_store %arg8[%c32_46, %c0_47], %96 {strides = array<i32>} : memref<64x32xf32, #tpu.memory_space<vmem>>, vector<16x32xf32>,
    %c48 = arith.constant 48 : index
    %c0_48 = arith.constant 0 : index
    %98 = vector.load %arg8[%c48, %c0_48] : memref<64x32xf32, #tpu.memory_space<vmem>>, vector<16x32xf32>
    tpu.vector_store %arg8[%c48, %c0_48], %8 {strides = array<i32>} : memref<64x32xf32, #tpu.memory_space<vmem>>, vector<16x32xf32>,
    return
  }
  func.func @transform_0(%arg0: i32) -> (i32, i32) {
    %c0_i32 = arith.constant 0 : i32
    %c0_i32_0 = arith.constant 0 : i32
    return %c0_i32, %arg0 : i32, i32
  }
  func.func @transform_1(%arg0: i32) -> (i32, i32) {
    %c0_i32 = arith.constant 0 : i32
    %c0_i32_0 = arith.constant 0 : i32
    %c0_i32_1 = arith.constant 0 : i32
    return %c0_i32, %c0_i32_0 : i32, i32
  }
  func.func @transform_2(%arg0: i32) -> (i32, i32) {
    %c0_i32 = arith.constant 0 : i32
    %c0_i32_0 = arith.constant 0 : i32
    %c0_i32_1 = arith.constant 0 : i32
    return %c0_i32, %c0_i32_0 : i32, i32
  }
  func.func @transform_3(%arg0: i32) -> (i32, i32) {
    %c0_i32 = arith.constant 0 : i32
    %c0_i32_0 = arith.constant 0 : i32
    %c0_i32_1 = arith.constant 0 : i32
    return %c0_i32, %c0_i32_0 : i32, i32
  }
  func.func @transform_4(%arg0: i32) -> (i32, i32) {
    %c0_i32 = arith.constant 0 : i32
    %c0_i32_0 = arith.constant 0 : i32
    %c0_i32_1 = arith.constant 0 : i32
    return %c0_i32, %c0_i32_0 : i32, i32
  }
  func.func @transform_5(%arg0: i32) -> (i32, i32) {
    %c0_i32 = arith.constant 0 : i32
    %c0_i32_0 = arith.constant 0 : i32
    %c0_i32_1 = arith.constant 0 : i32
    return %c0_i32, %c0_i32_0 : i32, i32
  }
  func.func @transform_6(%arg0: i32) -> (i32, i32) {
    %c0_i32 = arith.constant 0 : i32
    %c0_i32_0 = arith.constant 0 : i32
    %c0_i32_1 = arith.constant 0 : i32
    return %c0_i32, %c0_i32_0 : i32, i32
  }
  func.func @transform_7(%arg0: i32) -> (i32, i32) {
    %c0_i32 = arith.constant 0 : i32
    %c0_i32_0 = arith.constant 0 : i32
    return %c0_i32, %arg0 : i32, i32
  }
}

</mosaic_0001>

<llo_original>
// kernel: tpu_custom_call.1
$region0: #{tpu_custom_call.1}
  #allocation0 [shape = 'u32[]', space=smem, size = 0x4, offset = 0x4, fixed_abs, tag = 'smem constant byte address 0x4 - core index']
  #allocation1 [shape = 'u32[72,128]{1,0:T(1,128)}', space=vmem, size = 0x9000, scoped, tag = 'internal scratch']
  %s0 = inlined_call_operand.vmem [shape: f32[48,32], index: 0, kind: input, shape index: {}]
  %s1 = inlined_call_operand.vmem [shape: bf16[8,16], index: 1, kind: input, shape index: {}]
  %s2 = inlined_call_operand.vmem [shape: bf16[32,16], index: 2, kind: input, shape index: {}]
  %s3 = inlined_call_operand.vmem [shape: bf16[16,8], index: 3, kind: input, shape index: {}]
  %s4 = inlined_call_operand.vmem [shape: bf16[16,32], index: 4, kind: input, shape index: {}]
  %s5 = inlined_call_operand.vmem [shape: bf16[8,8], index: 5, kind: input, shape index: {}]
  %s6 = inlined_call_operand.vmem [shape: bf16[16,16], index: 6, kind: input, shape index: {}]
  %s7 = inlined_call_operand.vmem [shape: f32[64,32], index: 7, kind: output, shape index: {}]
  %s8 = sld [smem:[#allocation0]]
  $region38: #{tpu_custom_call.1} parent=0
    _
  %s10 = ssub.s32 1, %s8
  %s11 = scalar_select 0, %s10, %s8
  // Predicated region
  $region2: #{tpu_custom_call.1} parent=0 // pred_check
    _
  $region3: #{tpu_custom_call.1} parent=0 // pred_check_branch
    %13 = sbr.rel (0) target = $region5
  $region4: #{tpu_custom_call.1} parent=0 // pred_region
    _
  $region5: #{tpu_custom_call.1} parent=0 // pred_fallthru
    _
  // Predicated region
  $region6: #{tpu_custom_call.1} parent=0 // pred_check
    _
  $region7: #{tpu_custom_call.1} parent=0 // pred_check_branch
    %15 = sbr.rel (0) target = $region9
  $region8: #{tpu_custom_call.1} parent=0 // pred_region
    _
  $region9: #{tpu_custom_call.1} parent=0 // pred_fallthru
    _
  // Predicated region
  $region10: #{tpu_custom_call.1} parent=0 // pred_check
    _
  $region11: #{tpu_custom_call.1} parent=0 // pred_check_branch
    %17 = sbr.rel (0) target = $region13
  $region12: #{tpu_custom_call.1} parent=0 // pred_region
    _
  $region13: #{tpu_custom_call.1} parent=0 // pred_fallthru
    _
  // Predicated region
  $region14: #{tpu_custom_call.1} parent=0 // pred_check
    _
  $region15: #{tpu_custom_call.1} parent=0 // pred_check_branch
    %19 = sbr.rel (0) target = $region17
  $region16: #{tpu_custom_call.1} parent=0 // pred_region
    _
  $region17: #{tpu_custom_call.1} parent=0 // pred_fallthru
    _
  // Predicated region
  $region18: #{tpu_custom_call.1} parent=0 // pred_check
    _
  $region19: #{tpu_custom_call.1} parent=0 // pred_check_branch
    %21 = sbr.rel (0) target = $region21
  $region20: #{tpu_custom_call.1} parent=0 // pred_region
    _
  $region21: #{tpu_custom_call.1} parent=0 // pred_fallthru
    _
  // Predicated region
  $region22: #{tpu_custom_call.1} parent=0 // pred_check
    _
  $region23: #{tpu_custom_call.1} parent=0 // pred_check_branch
    %23 = sbr.rel (0) target = $region25
  $region24: #{tpu_custom_call.1} parent=0 // pred_region
    _
  $region25: #{tpu_custom_call.1} parent=0 // pred_fallthru
    _
  // Predicated region
  $region26: #{tpu_custom_call.1} parent=0 // pred_check
    _
  $region27: #{tpu_custom_call.1} parent=0 // pred_check_branch
    %25 = sbr.rel (0) target = $region29
  $region28: #{tpu_custom_call.1} parent=0 // pred_region
    _
  $region29: #{tpu_custom_call.1} parent=0 // pred_fallthru
    _
  %v27 = vld [vmem:[%s1] sm:$0xf]
  %v28 = vld [vmem:[%s2] sm:$0xf]
  %v29 = vld [vmem:[%s2 + $0x4] sm:$0xf]
  %v30 = vld [vmem:[%s2 + $0x8] sm:$0xf]
  %v31 = vld [vmem:[%s2 + $0xc] sm:$0xf]
  %v32 = vld [vmem:[%s3] sm:$0xf]
  %v33 = vld [vmem:[%s3 + $0x4] sm:$0xf]
  %v34 = vld [vmem:[%s4] sm:$0xf]
  %v35 = vld [vmem:[%s4 + $0x4] sm:$0xf]
  %v36 = vld [vmem:[%s5] sm:$0xf]
  %v37 = vld [vmem:[%s6] sm:$0xf]
  %v38 = vld [vmem:[%s6 + $0x4] sm:$0xf]
  %v39 = vld [vmem:[%s0] sm:$0xff]
  %v40 = vld [vmem:[%s0 + $0x8] sm:$0xff]
  %v41 = vld [vmem:[%s0 + $0x10] sm:$0xff]
  %v42 = vld [vmem:[%s0 + $0x18] sm:$0xff]
  %v43 = vld [vmem:[%s0 + $0x20] sm:$0xff]
  %v44 = vld [vmem:[%s0 + $0x28] sm:$0xff]
  %v45 = vpack.c.bf16 %v40, %v39
  %vm46 = vcmask 130048
  %v48 = vsel %vm46, %v27, 0
  %50 = vmatpush.bf16.msra.mxu0 0
  %51 = vmatpush.bf16.msra.mxu0 0
  %52 = vmatpush.bf16.msra.mxu0 0
  %53 = vmatpush.bf16.msra.mxu0 0
  %54 = vmatpush.bf16.msra.mxu0 0
  %55 = vmatpush.bf16.msra.mxu0 0
  %56 = vmatpush.bf16.msra.mxu0 0
  %57 = vmatpush.bf16.msra.mxu0 %v45
  %58 = vmatmul.bf16.gmra.mxu0 %v48
  %v59 = vpop.f32.mrf.mxu0
  %v60 = vadd.f32 0.0, %v59
  %v61 = vpop.f32.mrf.mxu0
  %62 = vdwg.mxu0
  %v63 = vpack.c.bf16 %v60, %v60
  %v68 = vunpack.c.l.b16 %v28
  %v69 = vunpack.c.l.b16 %v29
  %v70 = vunpack.c.l.b16 %v30
  %v71 = vunpack.c.l.b16 %v31
  %v72 = vpack.c.b16 %v69, %v68
  %v73 = vpack.c.b16 %v71, %v70
  %vm76 = vcmask 261120
  %v78 = vsel %vm76, %v63, 0
  %80 = vmatpush.bf16.msra.mxu0 0
  %81 = vmatpush.bf16.msra.mxu0 0
  %82 = vmatpush.bf16.msra.mxu0 0
  %83 = vmatpush.bf16.msra.mxu0 0
  %84 = vmatpush.bf16.msra.mxu0 0
  %85 = vmatpush.bf16.msra.mxu0 0
  %86 = vmatpush.bf16.msra.mxu0 %v73
  %87 = vmatpush.bf16.msra.mxu0 %v72
  %88 = vmatmul.bf16.gmra.mxu0 %v78
  %v89 = vpop.f32.mrf.mxu0
  %v90 = vadd.f32 0.0, %v89
  %v91 = vpop.f32.mrf.mxu0
  %92 = vdwg.mxu0
  %v93 = vpack.c.bf16 %v42, %v41
  %94 = vmatpush.bf16.msra.mxu0 0
  %95 = vmatpush.bf16.msra.mxu0 0
  %96 = vmatpush.bf16.msra.mxu0 0
  %97 = vmatpush.bf16.msra.mxu0 0
  %98 = vmatpush.bf16.msra.mxu0 0
  %99 = vmatpush.bf16.msra.mxu0 0
  %100 = vmatpush.bf16.msra.mxu0 0
  %101 = vmatpush.bf16.msra.mxu0 %v93
  %102 = vmatmul.bf16.gmra.mxu0 %v48
  %v103 = vpop.f32.mrf.mxu0
  %v104 = vadd.f32 0.0, %v103
  %v105 = vpop.f32.mrf.mxu0
  %106 = vdwg.mxu0
  %v107 = vpack.c.bf16 %v104, %v104
  %v109 = vsel %vm76, %v107, 0
  %111 = vmatpush.bf16.msra.mxu0 0
  %112 = vmatpush.bf16.msra.mxu0 0
  %113 = vmatpush.bf16.msra.mxu0 0
  %114 = vmatpush.bf16.msra.mxu0 0
  %115 = vmatpush.bf16.msra.mxu0 0
  %116 = vmatpush.bf16.msra.mxu0 0
  %117 = vmatpush.bf16.msra.mxu0 %v73
  %118 = vmatpush.bf16.msra.mxu0 %v72
  %119 = vmatmul.bf16.gmra.mxu0 %v109
  %v120 = vpop.f32.mrf.mxu0
  %v121 = vadd.f32 0.0, %v120
  %v122 = vpop.f32.mrf.mxu0
  %123 = vdwg.mxu0
  %v124 = vpack.c.bf16 %v44, %v43
  %125 = vmatpush.bf16.msra.mxu0 0
  %126 = vmatpush.bf16.msra.mxu0 0
  %127 = vmatpush.bf16.msra.mxu0 0
  %128 = vmatpush.bf16.msra.mxu0 0
  %129 = vmatpush.bf16.msra.mxu0 0
  %130 = vmatpush.bf16.msra.mxu0 0
  %131 = vmatpush.bf16.msra.mxu0 0
  %132 = vmatpush.bf16.msra.mxu0 %v124
  %133 = vmatmul.bf16.gmra.mxu0 %v48
  %v134 = vpop.f32.mrf.mxu0
  %v135 = vadd.f32 0.0, %v134
  %v136 = vpop.f32.mrf.mxu0
  %137 = vdwg.mxu0
  %v138 = vpack.c.bf16 %v135, %v135
  %v140 = vsel %vm76, %v138, 0
  %142 = vmatpush.bf16.msra.mxu0 0
  %143 = vmatpush.bf16.msra.mxu0 0
  %144 = vmatpush.bf16.msra.mxu0 0
  %145 = vmatpush.bf16.msra.mxu0 0
  %146 = vmatpush.bf16.msra.mxu0 0
  %147 = vmatpush.bf16.msra.mxu0 0
  %148 = vmatpush.bf16.msra.mxu0 %v73
  %149 = vmatpush.bf16.msra.mxu0 %v72
  %150 = vmatmul.bf16.gmra.mxu0 %v140
  %v151 = vpop.f32.mrf.mxu0
  %v152 = vadd.f32 0.0, %v151
  %v153 = vpop.f32.mrf.mxu0
  %154 = vdwg.mxu0
  %v155 = vmul.f32 %v152, %v152
  %v156 = vmul.f32 %v155, 0.00125
  %v157 = vmul.f32 %v155, 0.025
  %v158 = vpack.c.bf16 %v90, %v90
  %v161 = vunpack.c.l.b16 %v37
  %v162 = vunpack.c.l.b16 %v38
  %v163 = vpack.c.b16 %v162, %v161
  %v166 = vsel %vm46, %v158, 0
  %168 = vmatpush.bf16.msra.mxu0 0
  %169 = vmatpush.bf16.msra.mxu0 0
  %170 = vmatpush.bf16.msra.mxu0 0
  %171 = vmatpush.bf16.msra.mxu0 0
  %172 = vmatpush.bf16.msra.mxu0 0
  %173 = vmatpush.bf16.msra.mxu0 0
  %174 = vmatpush.bf16.msra.mxu0 0
  %175 = vmatpush.bf16.msra.mxu0 %v163
  %176 = vmatmul.bf16.gmra.mxu0 %v166
  %v177 = vpop.f32.mrf.mxu0
  %v178 = vadd.f32 0.0, %v177
  %v179 = vpop.f32.mrf.mxu0
  %180 = vdwg.mxu0
  %vm181 = vcmask 64512
  %v183 = vsel %vm181, %v36, 0
  %vm185 = vcmask 1043456
  %v186 = vsel %vm185, %v158, 0
  %188 = vmatpush.bf16.msra.mxu0 0
  %189 = vmatpush.bf16.msra.mxu0 0
  %190 = vmatpush.bf16.msra.mxu0 0
  %191 = vmatpush.bf16.msra.mxu0 0
  %192 = vmatpush.bf16.msra.mxu0 0
  %193 = vmatpush.bf16.msra.mxu0 0
  %194 = vmatpush.bf16.msra.mxu0 0
  %195 = vmatpush.bf16.msra.mxu0 %v186
  %196 = vmatmul.bf16.gmra.mxu0 %v183
  %v197 = vpop.f32.mrf.mxu0
  %v198 = vadd.f32 %v178, %v197
  %v199 = vpop.f32.mrf.mxu0
  %200 = vdwg.mxu0
  %v201 = vmul.f32 %v121, 0.05
  %v202 = vadd.f32 %v90, %v201
  %v203 = vmul.f32 %v156, %v198
  %v204 = vadd.f32 %v202, %v203
  %v205 = vpack.c.bf16 %v204, %v204
  %v207 = vsel %vm46, %v205, 0
  %209 = vmatpush.bf16.msra.mxu0 0
  %210 = vmatpush.bf16.msra.mxu0 0
  %211 = vmatpush.bf16.msra.mxu0 0
  %212 = vmatpush.bf16.msra.mxu0 0
  %213 = vmatpush.bf16.msra.mxu0 0
  %214 = vmatpush.bf16.msra.mxu0 0
  %215 = vmatpush.bf16.msra.mxu0 0
  %216 = vmatpush.bf16.msra.mxu0 %v163
  %217 = vmatmul.bf16.gmra.mxu0 %v207
  %v218 = vpop.f32.mrf.mxu0
  %v219 = vadd.f32 0.0, %v218
  %v220 = vpop.f32.mrf.mxu0
  %221 = vdwg.mxu0
  %v222 = vsel %vm185, %v205, 0
  %224 = vmatpush.bf16.msra.mxu0 0
  %225 = vmatpush.bf16.msra.mxu0 0
  %226 = vmatpush.bf16.msra.mxu0 0
  %227 = vmatpush.bf16.msra.mxu0 0
  %228 = vmatpush.bf16.msra.mxu0 0
  %229 = vmatpush.bf16.msra.mxu0 0
  %230 = vmatpush.bf16.msra.mxu0 0
  %231 = vmatpush.bf16.msra.mxu0 %v222
  %232 = vmatmul.bf16.gmra.mxu0 %v183
  %v233 = vpop.f32.mrf.mxu0
  %v234 = vadd.f32 %v219, %v233
  %v235 = vpop.f32.mrf.mxu0
  %236 = vdwg.mxu0
  %v237 = vadd.f32 %v198, %v234
  %v238 = vmul.f32 %v157, %v237
  %v239 = vadd.f32 %v121, %v238
  %v240 = vmul.f32 %v239, 0.05
  %v241 = vadd.f32 %v204, %v240
  %v242 = vmul.f32 %v156, %v234
  %v243 = vadd.f32 %v241, %v242
  %v244 = vpack.c.bf16 %v243, %v243
  %v246 = vsel %vm46, %v244, 0
  %248 = vmatpush.bf16.msra.mxu0 0
  %249 = vmatpush.bf16.msra.mxu0 0
  %250 = vmatpush.bf16.msra.mxu0 0
  %251 = vmatpush.bf16.msra.mxu0 0
  %252 = vmatpush.bf16.msra.mxu0 0
  %253 = vmatpush.bf16.msra.mxu0 0
  %254 = vmatpush.bf16.msra.mxu0 0
  %255 = vmatpush.bf16.msra.mxu0 %v163
  %256 = vmatmul.bf16.gmra.mxu0 %v246
  %v257 = vpop.f32.mrf.mxu0
  %v258 = vadd.f32 0.0, %v257
  %v259 = vpop.f32.mrf.mxu0
  %260 = vdwg.mxu0
  %v261 = vsel %vm185, %v244, 0
  %263 = vmatpush.bf16.msra.mxu0 0
  %264 = vmatpush.bf16.msra.mxu0 0
  %265 = vmatpush.bf16.msra.mxu0 0
  %266 = vmatpush.bf16.msra.mxu0 0
  %267 = vmatpush.bf16.msra.mxu0 0
  %268 = vmatpush.bf16.msra.mxu0 0
  %269 = vmatpush.bf16.msra.mxu0 0
  %270 = vmatpush.bf16.msra.mxu0 %v261
  %271 = vmatmul.bf16.gmra.mxu0 %v183
  %v272 = vpop.f32.mrf.mxu0
  %v273 = vadd.f32 %v258, %v272
  %v274 = vpop.f32.mrf.mxu0
  %275 = vdwg.mxu0
  %v276 = vadd.f32 %v234, %v273
  %v277 = vmul.f32 %v157, %v276
  %v278 = vadd.f32 %v239, %v277
  %v279 = vmul.f32 %v278, 0.05
  %v280 = vadd.f32 %v243, %v279
  %v281 = vmul.f32 %v156, %v273
  %v282 = vadd.f32 %v280, %v281
  %v283 = vpack.c.bf16 %v282, %v282
  %v285 = vsel %vm46, %v283, 0
  %287 = vmatpush.bf16.msra.mxu0 0
  %288 = vmatpush.bf16.msra.mxu0 0
  %289 = vmatpush.bf16.msra.mxu0 0
  %290 = vmatpush.bf16.msra.mxu0 0
  %291 = vmatpush.bf16.msra.mxu0 0
  %292 = vmatpush.bf16.msra.mxu0 0
  %293 = vmatpush.bf16.msra.mxu0 0
  %294 = vmatpush.bf16.msra.mxu0 %v163
  %295 = vmatmul.bf16.gmra.mxu0 %v285
  %v296 = vpop.f32.mrf.mxu0
  %v297 = vadd.f32 0.0, %v296
  %v298 = vpop.f32.mrf.mxu0
  %299 = vdwg.mxu0
  %v300 = vsel %vm185, %v283, 0
  %302 = vmatpush.bf16.msra.mxu0 0
  %303 = vmatpush.bf16.msra.mxu0 0
  %304 = vmatpush.bf16.msra.mxu0 0
  %305 = vmatpush.bf16.msra.mxu0 0
  %306 = vmatpush.bf16.msra.mxu0 0
  %307 = vmatpush.bf16.msra.mxu0 0
  %308 = vmatpush.bf16.msra.mxu0 0
  %309 = vmatpush.bf16.msra.mxu0 %v300
  %310 = vmatmul.bf16.gmra.mxu0 %v183
  %v311 = vpop.f32.mrf.mxu0
  %v312 = vadd.f32 %v297, %v311
  %v313 = vpop.f32.mrf.mxu0
  %314 = vdwg.mxu0
  %v315 = vadd.f32 %v273, %v312
  %v316 = vmul.f32 %v157, %v315
  %v317 = vadd.f32 %v278, %v316
  %v318 = vmul.f32 %v317, 0.05
  %v319 = vadd.f32 %v282, %v318
  %v320 = vmul.f32 %v156, %v312
  %v321 = vadd.f32 %v319, %v320
  %v322 = vpack.c.bf16 %v321, %v321
  %v324 = vsel %vm46, %v322, 0
  %326 = vmatpush.bf16.msra.mxu0 0
  %327 = vmatpush.bf16.msra.mxu0 0
  %328 = vmatpush.bf16.msra.mxu0 0
  %329 = vmatpush.bf16.msra.mxu0 0
  %330 = vmatpush.bf16.msra.mxu0 0
  %331 = vmatpush.bf16.msra.mxu0 0
  %332 = vmatpush.bf16.msra.mxu0 0
  %333 = vmatpush.bf16.msra.mxu0 %v163
  %334 = vmatmul.bf16.gmra.mxu0 %v324
  %v335 = vpop.f32.mrf.mxu0
  %v336 = vadd.f32 0.0, %v335
  %v337 = vpop.f32.mrf.mxu0
  %338 = vdwg.mxu0
  %v339 = vsel %vm185, %v322, 0
  %341 = vmatpush.bf16.msra.mxu0 0
  %342 = vmatpush.bf16.msra.mxu0 0
  %343 = vmatpush.bf16.msra.mxu0 0
  %344 = vmatpush.bf16.msra.mxu0 0
  %345 = vmatpush.bf16.msra.mxu0 0
  %346 = vmatpush.bf16.msra.mxu0 0
  %347 = vmatpush.bf16.msra.mxu0 0
  %348 = vmatpush.bf16.msra.mxu0 %v339
  %349 = vmatmul.bf16.gmra.mxu0 %v183
  %v350 = vpop.f32.mrf.mxu0
  %v351 = vadd.f32 %v336, %v350
  %v352 = vpop.f32.mrf.mxu0
  %353 = vdwg.mxu0
  %v354 = vadd.f32 %v312, %v351
  %v355 = vmul.f32 %v157, %v354
  %v356 = vadd.f32 %v317, %v355
  %v359 = vunpack.c.l.b16 %v32
  %v360 = vunpack.c.l.b16 %v33
  %v361 = vpack.c.b16 %v360, %v359
  %v363 = vsel %vm181, %v361, 0
  %365 = vmatpush.bf16.msra.mxu0 0
  %366 = vmatpush.bf16.msra.mxu0 0
  %367 = vmatpush.bf16.msra.mxu0 0
  %368 = vmatpush.bf16.msra.mxu0 0
  %369 = vmatpush.bf16.msra.mxu0 0
  %370 = vmatpush.bf16.msra.mxu0 0
  %371 = vmatpush.bf16.msra.mxu0 0
  %372 = vmatpush.bf16.msra.mxu0 %v339
  %373 = vmatmul.bf16.gmra.mxu0 %v363
  %v374 = vpop.f32.mrf.mxu0
  %v375 = vadd.f32 0.0, %v374
  %v376 = vpop.f32.mrf.mxu0
  %v377 = vadd.f32 0.0, %v376
  %378 = vdwg.mxu0
  %v379 = vpack.c.bf16 %v377, %v375
  %v382 = vunpack.c.l.b16 %v34
  %v383 = vunpack.c.l.b16 %v35
  %v384 = vpack.c.b16 %v383, %v382
  %v387 = vsel %vm46, %v379, 0
  %389 = vmatpush.bf16.msra.mxu0 0
  %390 = vmatpush.bf16.msra.mxu0 0
  %391 = vmatpush.bf16.msra.mxu0 0
  %392 = vmatpush.bf16.msra.mxu0 0
  %393 = vmatpush.bf16.msra.mxu0 0
  %394 = vmatpush.bf16.msra.mxu0 0
  %395 = vmatpush.bf16.msra.mxu0 0
  %396 = vmatpush.bf16.msra.mxu0 %v384
  %397 = vmatmul.bf16.gmra.mxu0 %v387
  %v398 = vpop.f32.mrf.mxu0
  %v399 = vadd.f32 0.0, %v398
  %v400 = vpop.f32.mrf.mxu0
  %v401 = vadd.f32 0.0, %v400
  %402 = vdwg.mxu0
  %403 = vst.msk [vmem:[%s7] sm:$0xff] %vm76, %v399
  %404 = vst.msk [vmem:[%s7 + $0x8] sm:$0xff] %vm76, %v401
  %v405 = vpack.c.bf16 %v356, %v356
  %v407 = vsel %vm185, %v405, 0
  %409 = vmatpush.bf16.msra.mxu0 0
  %410 = vmatpush.bf16.msra.mxu0 0
  %411 = vmatpush.bf16.msra.mxu0 0
  %412 = vmatpush.bf16.msra.mxu0 0
  %413 = vmatpush.bf16.msra.mxu0 0
  %414 = vmatpush.bf16.msra.mxu0 0
  %415 = vmatpush.bf16.msra.mxu0 0
  %416 = vmatpush.bf16.msra.mxu0 %v407
  %417 = vmatmul.bf16.gmra.mxu0 %v363
  %v418 = vpop.f32.mrf.mxu0
  %v419 = vadd.f32 0.0, %v418
  %v420 = vpop.f32.mrf.mxu0
  %v421 = vadd.f32 0.0, %v420
  %422 = vdwg.mxu0
  %v423 = vpack.c.bf16 %v421, %v419
  %v425 = vsel %vm46, %v423, 0
  %427 = vmatpush.bf16.msra.mxu0 0
  %428 = vmatpush.bf16.msra.mxu0 0
  %429 = vmatpush.bf16.msra.mxu0 0
  %430 = vmatpush.bf16.msra.mxu0 0
  %431 = vmatpush.bf16.msra.mxu0 0
  %432 = vmatpush.bf16.msra.mxu0 0
  %433 = vmatpush.bf16.msra.mxu0 0
  %434 = vmatpush.bf16.msra.mxu0 %v384
  %435 = vmatmul.bf16.gmra.mxu0 %v425
  %v436 = vpop.f32.mrf.mxu0
  %v437 = vadd.f32 0.0, %v436
  %v438 = vpop.f32.mrf.mxu0
  %v439 = vadd.f32 0.0, %v438
  %440 = vdwg.mxu0
  %441 = vst.msk [vmem:[%s7 + $0x10] sm:$0xff] %vm76, %v437
  %442 = vst.msk [vmem:[%s7 + $0x18] sm:$0xff] %vm76, %v439
  %443 = vmatpush.bf16.msra.mxu0 0
  %444 = vmatpush.bf16.msra.mxu0 0
  %445 = vmatpush.bf16.msra.mxu0 0
  %446 = vmatpush.bf16.msra.mxu0 0
  %447 = vmatpush.bf16.msra.mxu0 0
  %448 = vmatpush.bf16.msra.mxu0 0
  %449 = vmatpush.bf16.msra.mxu0 0
  %450 = vmatpush.bf16.msra.mxu0 %v186
  %451 = vmatmul.bf16.gmra.mxu0 %v363
  %v452 = vpop.f32.mrf.mxu0
  %v453 = vadd.f32 0.0, %v452
  %v454 = vpop.f32.mrf.mxu0
  %v455 = vadd.f32 0.0, %v454
  %456 = vdwg.mxu0
  %v457 = vpack.c.bf16 %v455, %v453
  %v459 = vsel %vm46, %v457, 0
  %461 = vmatpush.bf16.msra.mxu0 0
  %462 = vmatpush.bf16.msra.mxu0 0
  %463 = vmatpush.bf16.msra.mxu0 0
  %464 = vmatpush.bf16.msra.mxu0 0
  %465 = vmatpush.bf16.msra.mxu0 0
  %466 = vmatpush.bf16.msra.mxu0 0
  %467 = vmatpush.bf16.msra.mxu0 0
  %468 = vmatpush.bf16.msra.mxu0 %v384
  %469 = vmatmul.bf16.gmra.mxu0 %v459
  %v470 = vpop.f32.mrf.mxu0
  %v471 = vadd.f32 0.0, %v470
  %v472 = vpop.f32.mrf.mxu0
  %v473 = vadd.f32 0.0, %v472
  %474 = vdwg.mxu0
  %475 = vst.msk [vmem:[%s7 + $0x20] sm:$0xff] %vm76, %v471
  %476 = vst.msk [vmem:[%s7 + $0x28] sm:$0xff] %vm76, %v473
  %477 = vst.msk [vmem:[%s7 + $0x30] sm:$0xff] %vm76, %v43
  %478 = vst.msk [vmem:[%s7 + $0x38] sm:$0xff] %vm76, %v44
  // Predicated region
  $region30: #{tpu_custom_call.1} parent=0 // pred_check
    _
  $region31: #{tpu_custom_call.1} parent=0 // pred_check_branch
    %480 = sbr.rel (0) target = $region33
  $region32: #{tpu_custom_call.1} parent=0 // pred_region
    _
  $region33: #{tpu_custom_call.1} parent=0 // pred_fallthru
    _
  // Predicated region
  $region34: #{tpu_custom_call.1} parent=0 // pred_check
    _
  $region35: #{tpu_custom_call.1} parent=0 // pred_check_branch
    %482 = sbr.rel (0) target = $region37
  $region36: #{tpu_custom_call.1} parent=0 // pred_region
    _
  $region37: #{tpu_custom_call.1} parent=0 // pred_fallthru
    _

</llo_original>
